<compile_context>
chip_gen: v5e
topology: v5e:2x2
jax: 0.10.0
libtpu: 0.0.40
codegen_flags: <defaults>
</compile_context>

<pallas_src>
import jax
import jax.numpy as jnp
from jax import lax
from jax.experimental import pallas as pl
from jax.experimental.pallas import tpu as pltpu


def _stream_kernel_blocked_w(w_ref, x_ref, o_ref):
    # w_ref: (1, TS) weight tile (block index constant along the inner batch
    # axis -> resident across batch tiles).  x_ref/o_ref: (TB, TS).
    o_ref[...] = (x_ref[...] * w_ref[...]).astype(o_ref.dtype)


def _stream_kernel_resident_w(w_ref, x_ref, o_ref):
    # w_ref: (ns, TS) — the whole weight row, pre-tiled in the wrapper, loaded
    # ONCE and kept resident in VMEM; row s holds the weights for size-tile s.
    s = pl.program_id(0)
    w = w_ref[pl.ds(s, 1), :]                              # (1, TS)
    o_ref[...] = (x_ref[...] * w).astype(o_ref.dtype)


def _fused_kernel(p_ref, x_ref, o_ref):
    # p_ref: (L, TS) stacked layer params (resident across the inner batch
    # axis).  Recompute w = sum_i (i+1) * p_i per tile: L*TS VPU ops, which is
    # negligible next to the TB*TS HBM stream, and keeps the kernel free of
    # cross-iteration state (safe under megacore "parallel" sharding).
    coef = (lax.broadcasted_iota(jnp.int32, p_ref.shape, 0) + 1).astype(p_ref.dtype)
    w = jnp.sum(p_ref[...] * coef, axis=0, keepdims=True)  # (1, TS)
    o_ref[...] = (x_ref[...] * w).astype(o_ref.dtype)


def _pick_tile(dim, requested, align):
    """Tile size for one axis: the full dim if it fits, else prefer an exact,
    `align`-aligned divisor (no ragged trailing tile / masked stores) without
    dropping below half the request, else the aligned clamp (ragged last tile)."""
    if dim <= requested:
        return dim
    req = max(align, (requested // align) * align)
    t = req
    while t >= max(align, req // 2):
        if dim % t == 0:
            return t
        t -= align
    return req


def simple_model_forward(params_stacked, x, *, tb=512, ts=2048, x_buffers=3,
                         fuse_combine=None):
    """params_stacked: (num_layers, size), x: (batch, size) -> (batch, size)."""
    L, size = params_stacked.shape
    B, size_x = x.shape
    assert size_x == size

    if fuse_combine is None:
        # Fuse the (tiny) layer combine into the kernel only when the stream is
        # small enough that a separate XLA op + HBM round trip of w matters.
        fuse_combine = (B * size) <= (1 << 18)

    tb_eff = _pick_tile(B, tb, 8)
    ts_eff = _pick_tile(size, ts, 128)
    nb = pl.cdiv(B, tb_eff)
    ns = pl.cdiv(size, ts_eff)

    itemsize = x.dtype.itemsize

    # x in_spec: optionally deeper pipelining (hides DMA-issue latency on v7x's
    # 3.2 TB/s HBM); only bother when the grid is long enough to pipeline.
    x_spec_kwargs = {}
    if x_buffers != 2 and ns * nb > 2:
        x_spec_kwargs["pipeline_mode"] = pl.Buffered(x_buffers)
    x_spec = pl.BlockSpec((tb_eff, ts_eff), lambda s, b: (b, s), **x_spec_kwargs)
    out_spec = pl.BlockSpec((tb_eff, ts_eff), lambda s, b: (b, s))

    if fuse_combine:
        kernel = _fused_kernel
        first_arg = params_stacked
        first_spec = pl.BlockSpec((L, ts_eff), lambda s, b: (0, s))
        resident_bytes = 2 * L * ts_eff * params_stacked.dtype.itemsize
        flops = B * size + 2 * L * size * nb
        bytes_accessed = (L * size * params_stacked.dtype.itemsize
                          + 2 * B * size * itemsize)
    else:
        # Hoisted, batch-independent layer combine: w[s] = sum_i (i+1)*param_i[s]
        coef = jnp.arange(1, L + 1, dtype=params_stacked.dtype)[:, None]
        w = jnp.sum(params_stacked * coef, axis=0, keepdims=True)   # (1, size)
        if ns > 1 and size % ts_eff == 0 and ts_eff % 128 == 0:
            # Fully resident weight row: one DMA total, no per-size-tile
            # re-fetch or extra double-buffer pair.
            kernel = _stream_kernel_resident_w
            first_arg = w.reshape(ns, ts_eff)
            first_spec = pl.BlockSpec((ns, ts_eff), lambda s, b: (0, 0))
        else:
            kernel = _stream_kernel_blocked_w
            first_arg = w
            first_spec = pl.BlockSpec((1, ts_eff), lambda s, b: (0, s))
        resident_bytes = 2 * size * w.dtype.itemsize
        flops = B * size
        bytes_accessed = size * w.dtype.itemsize + 2 * B * size * itemsize

    # VMEM budget: x (x_buffers deep) + y (double buffered) + weights/params.
    tile_bytes = tb_eff * ts_eff * itemsize
    est = (x_buffers + 2) * tile_bytes + resident_bytes + (2 << 20)
    # v5e only grants 16 MiB scoped VMEM by default (v6e/v7x: 32 MiB); ask
    # explicitly, capped well under v7x's 64 MiB physical VMEM.
    vmem_limit = int(min(max(est, 32 << 20), 48 << 20))

    return pl.pallas_call(
        kernel,
        out_shape=jax.ShapeDtypeStruct((B, size), x.dtype),
        # size tiles outer, batch tiles inner -> weight/params block index is
        # constant across consecutive steps (tile stays resident in VMEM).
        grid=(ns, nb),
        in_specs=[first_spec, x_spec],
        out_specs=out_spec,
        compiler_params=pltpu.CompilerParams(
            dimension_semantics=("parallel", "parallel"),
            vmem_limit_bytes=vmem_limit,
        ),
        cost_estimate=pl.CostEstimate(
            flops=int(flops),
            transcendentals=0,
            bytes_accessed=int(bytes_accessed),
        ),
    )(first_arg, x)


def reference_forward(params_stacked, x):
    # Mirrors the PyTorch loop: y = sum_i (i+1) * param_i * x
    y = jnp.zeros_like(x)
    for i in range(params_stacked.shape[0]):
        y = y + (i + 1) * params_stacked[i][None, :] * x
    return y


if __name__ == "__main__":
    key = jax.random.PRNGKey(0)

    # --- Toy shapes matching the apex test (small-batch regime: exercises the
    #     fused layer-combine path). ---
    num_layers, size, batch = 4, 128, 8
    kp, kx, key = jax.random.split(key, 3)
    # torch.rand(1, size) + 1  -> uniform [1, 2)
    params = jax.random.uniform(kp, (num_layers, size), jnp.float32) + 1.0
    x = jax.random.uniform(kx, (batch, size), jnp.float32)

    y = jax.block_until_ready(simple_model_forward(params, x))
    y_ref = reference_forward(params, x)
    assert y.shape == (batch, size)
    assert jnp.allclose(y, y_ref, rtol=1e-5, atol=1e-5), "fused path mismatch"

    # --- Larger multi-tile case (hoisted combine + fully resident weight row +
    #     deeper x buffering), still tiny enough to run instantly. ---
    L2, size2, batch2 = 3, 1024, 256
    kp2, kx2, key = jax.random.split(key, 3)
    params2 = jax.random.uniform(kp2, (L2, size2), jnp.float32) + 1.0
    x2 = jax.random.uniform(kx2, (batch2, size2), jnp.float32)

    y2 = jax.block_until_ready(
        simple_model_forward(params2, x2, tb=128, ts=256, fuse_combine=False))
    y2_ref = reference_forward(params2, x2)
    assert jnp.allclose(y2, y2_ref, rtol=1e-5, atol=1e-5), "hoisted path mismatch"

    print("KERNEL_OK")
</pallas_src>

<mosaic_0001>
module attributes {stable_mosaic.version = 11 : i64} {
  func.func @_fused_kernel(%arg0: i32, %arg1: i32, %arg2: memref<4x128xf32, #tpu.memory_space<vmem>>, %arg3: memref<8x128xf32, #tpu.memory_space<vmem>>, %arg4: memref<8x128xf32, #tpu.memory_space<vmem>>) attributes {dimension_semantics = [#tpu.dimension_semantics<parallel>, #tpu.dimension_semantics<parallel>], iteration_bounds = array<i64: 1, 1>, scalar_prefetch = 0 : i64, scratch_operands = 0 : i64, tpu.core_type = #tpu.core_type<tc>, window_params = [{transform_indices = @transform_0, window_bounds = array<i64: 4, 128>}, {transform_indices = @transform_1, window_bounds = array<i64: 8, 128>}, {transform_indices = @transform_2, window_bounds = array<i64: 8, 128>}]} {
    %0 = tpu.iota {dimensions = array<i32: 0>} : vector<4x128xi32>
    %c1_i32 = arith.constant 1 : i32
    %1 = vector.broadcast %c1_i32 : i32 to vector<4x128xi32>
    %2 = arith.addi %0, %1 : vector<4x128xi32>
    %3 = arith.sitofp %2 : vector<4x128xi32> to vector<4x128xf32>
    %c0 = arith.constant 0 : index
    %c0_0 = arith.constant 0 : index
    %4 = vector.load %arg2[%c0, %c0_0] : memref<4x128xf32, #tpu.memory_space<vmem>>, vector<4x128xf32>
    %5 = arith.mulf %4, %3 : vector<4x128xf32>
    %cst = arith.constant dense<0.000000e+00> : vector<128xf32>
    %6 = vector.multi_reduction <add>, %5, %cst [0] : vector<4x128xf32> to vector<128xf32>
    %7 = vector.shape_cast %6 : vector<128xf32> to vector<1x128xf32>
    %c0_1 = arith.constant 0 : index
    %c0_2 = arith.constant 0 : index
    %8 = vector.load %arg3[%c0_1, %c0_2] : memref<8x128xf32, #tpu.memory_space<vmem>>, vector<8x128xf32>
    %9 = vector.broadcast %7 : vector<1x128xf32> to vector<8x128xf32>
    %10 = arith.mulf %8, %9 : vector<8x128xf32>
    %c0_3 = arith.constant 0 : index
    %c0_4 = arith.constant 0 : index
    %11 = vector.load %arg4[%c0_3, %c0_4] : memref<8x128xf32, #tpu.memory_space<vmem>>, vector<8x128xf32>
    tpu.vector_store %arg4[%c0_3, %c0_4], %10 {strides = array<i32>} : memref<8x128xf32, #tpu.memory_space<vmem>>, vector<8x128xf32>,
    return
  }
  func.func @transform_0(%arg0: i32, %arg1: i32) -> (i32, i32) {
    %c0_i32 = arith.constant 0 : i32
    %c0_i32_0 = arith.constant 0 : i32
    return %c0_i32, %arg0 : i32, i32
  }
  func.func @transform_1(%arg0: i32, %arg1: i32) -> (i32, i32) {
    %c0_i32 = arith.constant 0 : i32
    return %arg1, %arg0 : i32, i32
  }
  func.func @transform_2(%arg0: i32, %arg1: i32) -> (i32, i32) {
    %c0_i32 = arith.constant 0 : i32
    return %arg1, %arg0 : i32, i32
  }
}

</mosaic_0001>

<llo_original>
// kernel: tpu_custom_call.1
$region0: #{tpu_custom_call.1}
  #allocation0 [shape = 'u32[]', space=smem, size = 0x4, offset = 0x4, fixed_abs, tag = 'smem constant byte address 0x4 - core index']
  #allocation1 [shape = 'u32[72,128]{1,0:T(1,128)}', space=vmem, size = 0x9000, scoped, tag = 'internal scratch']
  %s0 = inlined_call_operand.hbm [shape: f32[4,128], index: 0, kind: input, shape index: {}]
  %s1 = inlined_call_operand.hbm [shape: f32[8,128], index: 1, kind: input, shape index: {}]
  %s2 = inlined_call_operand.hbm [shape: f32[8,128], index: 2, kind: output, shape index: {}]
  %s3 = sld [smem:[#allocation0]]
  $region26: #{tpu_custom_call.1} parent=0
    _
  %s5 = ssub.s32 1, %s3
  %s6 = scalar_select 0, %s5, %s3
  $region1: #{tpu_custom_call.1} parent=0
    #allocation2 [shape = 'u8[2048]{0}', space=vmem, size = 0x800, scoped, tag = 'input window, operand 0, single buffered']
    #allocation3 [shape = 's32[1]{0}', space=sflag, size = 0x4, scoped, tag = 'scoped memory for tpu_custom_call.1']
    #allocation4 [shape = 's32[1]{0}', space=sflag, size = 0x4, scoped, tag = 'scoped memory for tpu_custom_call.1']
    #allocation5 [shape = 'u8[4096]{0}', space=vmem, size = 0x1000, scoped, tag = 'input window, operand 1, single buffered']
    #allocation6 [shape = 's32[1]{0}', space=sflag, size = 0x4, scoped, tag = 'scoped memory for tpu_custom_call.1']
    #allocation7 [shape = 'u8[4096]{0}', space=vmem, size = 0x1000, scoped, tag = 'output window, operand 0, single buffered']
    %7 = vsyncpa [#allocation3], 0
    %8 = vsyncpa [#allocation6], 0
    %9 = vsyncpa [#allocation4], 0
    // Predicated region
    $region2: #{tpu_custom_call.1} parent=1 // pred_check
      _
    $region3: #{tpu_custom_call.1} parent=1 // pred_check_branch
      %11 = sbr.rel (0) target = $region5
    $region4: #{tpu_custom_call.1} parent=1 // pred_region
      %13 = vsyncadd [#allocation3], 0
      %s15 = sshll.u32 %s0, 4
      %s16 = int_to_ptr.hbm [resolvable:$true] %s15
      %s17 = sshll.u32 [#allocation2], 4
      %s18 = int_to_ptr.vmem [resolvable:$true] %s17
      %20 = dma.hbm_to_vmem [thread:$0]  %s16, 64, %s18, [#allocation3]
    $region5: #{tpu_custom_call.1} parent=1 // pred_fallthru
      _
    // Predicated region
    $region6: #{tpu_custom_call.1} parent=1 // pred_check
      _
    $region7: #{tpu_custom_call.1} parent=1 // pred_check_branch
      %22 = sbr.rel (0) target = $region9
    $region8: #{tpu_custom_call.1} parent=1 // pred_region
      %24 = vsyncadd [#allocation6], 0
      %s26 = sshll.u32 %s1, 4
      %s27 = int_to_ptr.hbm [resolvable:$true] %s26
      %s28 = sshll.u32 [#allocation5], 4
      %s29 = int_to_ptr.vmem [resolvable:$true] %s28
      %31 = dma.hbm_to_vmem [thread:$0]  %s27, 128, %s29, [#allocation6]
    $region9: #{tpu_custom_call.1} parent=1 // pred_fallthru
      _
    // Predicated region
    $region10: #{tpu_custom_call.1} parent=1 // pred_check
      _
    $region11: #{tpu_custom_call.1} parent=1 // pred_check_branch
      %33 = sbr.rel (0) target = $region13
    $region12: #{tpu_custom_call.1} parent=1 // pred_region
      %35 = dma.done [#allocation3], 64
    $region13: #{tpu_custom_call.1} parent=1 // pred_fallthru
      _
    // Predicated region
    $region14: #{tpu_custom_call.1} parent=1 // pred_check
      _
    $region15: #{tpu_custom_call.1} parent=1 // pred_check_branch
      %37 = sbr.rel (0) target = $region17
    $region16: #{tpu_custom_call.1} parent=1 // pred_region
      %39 = dma.done [#allocation6], 128
    $region17: #{tpu_custom_call.1} parent=1 // pred_fallthru
      _
    %v40 = vlaneseq
    %v41 = vshrl.u32 %v40, 7
    %v42 = vadd.s32 %v41, 1
    %v43 = vcvt.s32.f32 %v42
    %v44 = vld [vmem:[#allocation2] sm:$0xf]
    %v45 = vmul.f32 %v44, %v43
    %vm46 = vcmask 1043456
    %v47 = vsel %vm46, %v45, 0.0
    %v48 = vrot.slane %v47, 4
    %v49 = vadd.f32 %v47, %v48
    %v50 = vrot.slane %v49, 2
    %v51 = vadd.f32 %v49, %v50
    %v52 = vrot.slane %v51, 1
    %v53 = vadd.f32 %v51, %v52
    %v54 = vld [vmem:[#allocation5] sm:$0xff]
    %v55 = vmul.f32 %v54, %v53
    %56 = vst [vmem:[#allocation7] sm:$0xff] %v55
    // Predicated region
    $region18: #{tpu_custom_call.1} parent=1 // pred_check
      _
    $region19: #{tpu_custom_call.1} parent=1 // pred_check_branch
      %58 = sbr.rel (0) target = $region21
    $region20: #{tpu_custom_call.1} parent=1 // pred_region
      %60 = vsyncadd [#allocation4], 0
      %s62 = sshll.u32 [#allocation7], 4
      %s63 = int_to_ptr.vmem [resolvable:$true] %s62
      %s64 = sshll.u32 %s2, 4
      %s65 = int_to_ptr.hbm [resolvable:$true] %s64
      %67 = dma.vmem_to_hbm [thread:$0]  %s63, 128, %s65, [#allocation4]
    $region21: #{tpu_custom_call.1} parent=1 // pred_fallthru
      _
    // Predicated region
    $region22: #{tpu_custom_call.1} parent=1 // pred_check
      _
    $region23: #{tpu_custom_call.1} parent=1 // pred_check_branch
      %69 = sbr.rel (0) target = $region25
    $region24: #{tpu_custom_call.1} parent=1 // pred_region
      %71 = dma.done [#allocation4], 128
    $region25: #{tpu_custom_call.1} parent=1 // pred_fallthru
      _
    %72 = vsyncpa [#allocation3], 1
    %73 = vsyncpa [#allocation6], 1
    %74 = vsyncpa [#allocation4], 1

</llo_original>
